<compile_context>
chip_gen: v5e
topology: v5e:2x2
jax: 0.10.0
libtpu: 0.0.40
codegen_flags: <defaults>
</compile_context>

<pallas_src>
import functools

import jax
import jax.numpy as jnp
from jax.experimental import pallas as pl
from jax.experimental.pallas import tpu as pltpu

_LANE = 128
_TARGET_BLOCK_BYTES = 2 << 20   # ~2 MiB per input block (native dtype)


def _floor_to(x, m):
    return (x // m) * m


def _num_tensorcores():
    # v7x has 2 TensorCores per chip; v5e/v6e have 1.  Only CORE_PARALLEL
    # changes codegen, so enable the split only where it can help.
    try:
        kind = jax.devices()[0].device_kind.lower()
    except Exception:
        return 1
    return 2 if ("v7" in kind or "7x" in kind) else 1


def _dice_partial_kernel(p_ref, t_ref, out_ref, num_acc, den_acc, *,
                         p, rows, cols, rb, cb, nrb, rpc, acc_r,
                         has_core_axis, has_col_axis,
                         need_row_mask, need_col_mask):
    # Grid axes: [core (v7x only)], row-blocks, [col-blocks (if >1)].
    if has_core_axis:
        core = pl.program_id(0)
        ri = pl.program_id(1)
        n_ri = pl.num_programs(1)
        if has_col_axis:
            ci = pl.program_id(2)
            n_ci = pl.num_programs(2)
        else:
            ci, n_ci = 0, 1
    else:
        core = 0
        ri = pl.program_id(0)
        n_ri = pl.num_programs(0)
        if has_col_axis:
            ci = pl.program_id(1)
            n_ci = pl.num_programs(1)
        else:
            ci, n_ci = 0, 1

    g = core * rpc + ri           # logical (global, unclamped) row-block index

    first = (ri == 0)
    last = (ri == n_ri - 1)
    if has_col_axis:
        first = first & (ci == 0)
        last = last & (ci == n_ci - 1)

    @pl.when(first)
    def _init():
        zeros = jnp.zeros((acc_r, cb), jnp.float32)
        num_acc[core] = zeros
        den_acc[core] = zeros

    x = p_ref[...].astype(jnp.float32)
    y = t_ref[...].astype(jnp.float32)
    xy = x * y
    if p == 2:
        xpyp = x * x + y * y
    else:
        xpyp = x ** p + y ** p

    def _accum(a, b):
        # Sublane add-tree inside (8,128)-friendly tiles, then one small
        # VMEM accumulate -- no per-data-vreg scratch load/store traffic.
        if rb > 8 and rb % 8 == 0:
            a = a.reshape(rb // 8, 8, cb).sum(axis=0)
            b = b.reshape(rb // 8, 8, cb).sum(axis=0)
        num_acc[core] = num_acc[core] + a
        den_acc[core] = den_acc[core] + b

    if need_row_mask or need_col_mask:
        conds = []
        if need_row_mask:
            conds.append(g >= nrb - 1)          # ragged last block or OOB block
        if need_col_mask:
            conds.append(ci == n_ci - 1)
        is_boundary = conds[0]
        for c in conds[1:]:
            is_boundary = is_boundary | c

        @pl.when(is_boundary)
        def _masked():
            a, b = xy, xpyp
            if need_row_mask:
                row_ids = jax.lax.broadcasted_iota(jnp.int32, (rb, 1), 0) + g * rb
                rmask = row_ids < rows
                a = jnp.where(rmask, a, 0.0)
                b = jnp.where(rmask, b, 0.0)
            if need_col_mask:
                col_ids = jax.lax.broadcasted_iota(jnp.int32, (1, cb), 1) + ci * cb
                cmask = col_ids < cols
                a = jnp.where(cmask, a, 0.0)
                b = jnp.where(cmask, b, 0.0)
            _accum(a, b)

        @pl.when(jnp.logical_not(is_boundary))
        def _fast():
            _accum(xy, xpyp)
    else:
        _accum(xy, xpyp)

    @pl.when(last)
    def _finish():
        # Raw partial sums; smooth / *2 / 1 - num/den applied in the wrapper.
        out_ref[0, 0] = jnp.sum(num_acc[core])
        out_ref[0, 1] = jnp.sum(den_acc[core])


def binary_dice_loss(predict, target, smooth=1, p=2):
    assert predict.shape[0] == target.shape[0], "predict & target batch size don't match"
    assert predict.shape == target.shape

    n = predict.shape[0]
    total = predict.size
    itemsize = jnp.dtype(predict.dtype).itemsize
    sub_pack = max(8, 8 * (4 // itemsize))       # 8 (f32) / 16 (bf16) / 32 (int8)

    # Dense, copy-free 2-D layout (reshape of a contiguous buffer is free).
    if total % _LANE == 0:
        rows, cols = total // _LANE, _LANE       # lane-dense, sublane-dense
    else:
        rows, cols = n, total // n               # original (N, F) view

    pred2 = predict.reshape(rows, cols)
    targ2 = target.reshape(rows, cols)

    # Column block: full dim if narrower than a lane, else a multiple of 128.
    if cols <= _LANE:
        cb = cols
    else:
        cb = min(_floor_to(cols, _LANE), 16 * _LANE)

    # Row block: dtype-packing aligned, ~_TARGET_BLOCK_BYTES per input block.
    if rows <= sub_pack:
        rb = rows
    else:
        row_budget = max(
            sub_pack, _floor_to(_TARGET_BLOCK_BYTES // max(1, cb * itemsize), sub_pack))
        rb = max(sub_pack, min(_floor_to(rows, sub_pack), row_budget))

    nrb = pl.cdiv(rows, rb)
    ncb = pl.cdiv(cols, cb)
    has_col_axis = ncb > 1

    num_cores = _num_tensorcores()
    if num_cores > 1 and nrb >= 2 * num_cores:
        has_core_axis = True
        rpc = pl.cdiv(nrb, num_cores)            # row-blocks per core
    else:
        num_cores = 1
        has_core_axis = False
        rpc = nrb

    need_row_mask = (rows % rb != 0) or (num_cores * rpc != nrb)
    need_col_mask = (cols % cb != 0)

    acc_r = 8 if (rb > 8 and rb % 8 == 0) else rb
    last_rb = nrb - 1

    if has_core_axis:
        if has_col_axis:
            grid = (num_cores, rpc, ncb)
            in_map = lambda c, i, j: (jnp.minimum(c * rpc + i, last_rb), j)
            out_map = lambda c, i, j: (c, 0)
            dims = (pltpu.CORE_PARALLEL, "arbitrary", "arbitrary")
        else:
            grid = (num_cores, rpc)
            in_map = lambda c, i: (jnp.minimum(c * rpc + i, last_rb), 0)
            out_map = lambda c, i: (c, 0)
            dims = (pltpu.CORE_PARALLEL, "arbitrary")
    else:
        if has_col_axis:
            grid = (nrb, ncb)
            in_map = lambda i, j: (i, j)
            out_map = lambda i, j: (0, 0)
            dims = ("arbitrary", "arbitrary")
        else:
            grid = (nrb,)
            in_map = lambda i: (i, 0)
            out_map = lambda i: (0, 0)
            dims = ("arbitrary",)

    kernel = functools.partial(
        _dice_partial_kernel, p=p, rows=rows, cols=cols, rb=rb, cb=cb,
        nrb=nrb, rpc=rpc, acc_r=acc_r,
        has_core_axis=has_core_axis, has_col_axis=has_col_axis,
        need_row_mask=need_row_mask, need_col_mask=need_col_mask)

    # 2 inputs x 2 pipeline buffers x block + accumulators + headroom.
    block_bytes = rb * cb * itemsize
    scratch_bytes = 2 * num_cores * max(acc_r, 8) * max(cb, _LANE) * 4
    vmem_limit = int(min(max(4 * block_bytes + scratch_bytes + (4 << 20),
                             16 << 20), 32 << 20))

    parts = pl.pallas_call(
        kernel,
        out_shape=jax.ShapeDtypeStruct((num_cores, 2), jnp.float32),
        grid_spec=pltpu.PrefetchScalarGridSpec(
            num_scalar_prefetch=0,
            grid=grid,
            in_specs=[
                pl.BlockSpec((rb, cb), in_map),
                pl.BlockSpec((rb, cb), in_map),
            ],
            out_specs=pl.BlockSpec((1, 2), out_map, memory_space=pltpu.SMEM),
            scratch_shapes=[
                pltpu.VMEM((num_cores, acc_r, cb), jnp.float32),   # numerator
                pltpu.VMEM((num_cores, acc_r, cb), jnp.float32),   # denominator
            ],
        ),
        compiler_params=pltpu.CompilerParams(
            dimension_semantics=dims,
            vmem_limit_bytes=vmem_limit,
        ),
    )(pred2, targ2)

    num = 2.0 * jnp.sum(parts[:, 0]) + jnp.float32(smooth)
    den = jnp.sum(parts[:, 1]) + jnp.float32(smooth)
    return jnp.float32(1.0) - num / den


def _reference(predict, target, smooth=1, p=2):
    n = predict.shape[0]
    pr = predict.reshape(n, -1).astype(jnp.float32)
    tg = target.reshape(n, -1).astype(jnp.float32)
    num = jnp.sum(pr * tg) * 2 + smooth
    den = jnp.sum(pr ** p + tg ** p) + smooth
    return 1.0 - num / den


if __name__ == "__main__":
    key = jax.random.PRNGKey(0)
    k1, k2, k3, k4, k5, k6 = jax.random.split(key, 6)

    # Case 1: lane-aligned element count (2*4*16*16 = 2048 = 16*128).
    predict = jax.nn.sigmoid(jax.random.normal(k1, (2, 4, 16, 16), dtype=jnp.float32))
    target = (jax.random.uniform(k2, (2, 4, 16, 16)) > 0.5).astype(jnp.float32)
    loss = jax.block_until_ready(binary_dice_loss(predict, target, smooth=1, p=2))
    ref = jax.block_until_ready(_reference(predict, target, smooth=1, p=2))
    assert jnp.allclose(loss, ref, rtol=1e-5, atol=1e-6), (loss, ref)

    # Case 2: non-aligned element count -> exercises the boundary-mask path.
    predict2 = jax.nn.sigmoid(jax.random.normal(k3, (3, 5, 77), dtype=jnp.float32))
    target2 = (jax.random.uniform(k4, (3, 5, 77)) > 0.5).astype(jnp.float32)
    loss2 = jax.block_until_ready(binary_dice_loss(predict2, target2, smooth=1, p=2))
    ref2 = jax.block_until_ready(_reference(predict2, target2, smooth=1, p=2))
    assert jnp.allclose(loss2, ref2, rtol=1e-5, atol=1e-6), (loss2, ref2)

    # Case 3: bf16 inputs -> exercises the dtype-packed (16-row) tiling path.
    predict3 = jax.nn.sigmoid(
        jax.random.normal(k5, (4, 8, 64), dtype=jnp.float32)).astype(jnp.bfloat16)
    target3 = (jax.random.uniform(k6, (4, 8, 64)) > 0.5).astype(jnp.bfloat16)
    loss3 = jax.block_until_ready(binary_dice_loss(predict3, target3, smooth=1, p=2))
    ref3 = jax.block_until_ready(_reference(predict3, target3, smooth=1, p=2))
    assert jnp.allclose(loss3, ref3, rtol=1e-3, atol=1e-4), (loss3, ref3)

    print("KERNEL_OK")
</pallas_src>

<mosaic_0001>
module attributes {stable_mosaic.version = 11 : i64} {
  func.func @_dice_partial_kernel(%arg0: i32, %arg1: memref<16x128xf32, #tpu.memory_space<vmem>>, %arg2: memref<16x128xf32, #tpu.memory_space<vmem>>, %arg3: memref<1x2xf32, #tpu.memory_space<smem>>, %arg4: memref<1x8x128xf32, #tpu.memory_space<vmem>>, %arg5: memref<1x8x128xf32, #tpu.memory_space<vmem>>) attributes {dimension_semantics = [#tpu.dimension_semantics<arbitrary>], iteration_bounds = array<i64: 1>, scalar_prefetch = 0 : i64, scratch_operands = 2 : i64, tpu.core_type = #tpu.core_type<tc>, window_params = [{transform_indices = @transform_0, window_bounds = array<i64: 16, 128>}, {transform_indices = @transform_1, window_bounds = array<i64: 16, 128>}, {transform_indices = @transform_2, window_bounds = array<i64: 1, 2>}]} {
    %c0_i32 = arith.constant 0 : i32
    %0 = arith.cmpi eq, %arg0, %c0_i32 : i32
    %c0_i32_0 = arith.constant 0 : i32
    %1 = arith.cmpi eq, %arg0, %c0_i32_0 : i32
    %2 = arith.extui %0 : i1 to i32
    %c0_i32_1 = arith.constant 0 : i32
    %3 = arith.cmpi ne, %2, %c0_i32_1 : i32
    scf.if %3 {
      %cst_19 = arith.constant 0.000000e+00 : f32
      %28 = vector.broadcast %cst_19 : f32 to vector<8x128xf32>
      %c0_20 = arith.constant 0 : index
      %c0_21 = arith.constant 0 : index
      %c0_22 = arith.constant 0 : index
      %29 = vector.load %arg4[%c0_20, %c0_21, %c0_22] : memref<1x8x128xf32, #tpu.memory_space<vmem>>, vector<1x8x128xf32>
      %30 = vector.shape_cast %29 : vector<1x8x128xf32> to vector<8x128xf32>
      %31 = vector.shape_cast %28 : vector<8x128xf32> to vector<1x8x128xf32>
      tpu.vector_store %arg4[%c0_20, %c0_21, %c0_22], %31 {strides = array<i32>} : memref<1x8x128xf32, #tpu.memory_space<vmem>>, vector<1x8x128xf32>,
      %c0_23 = arith.constant 0 : index
      %c0_24 = arith.constant 0 : index
      %c0_25 = arith.constant 0 : index
      %32 = vector.load %arg5[%c0_23, %c0_24, %c0_25] : memref<1x8x128xf32, #tpu.memory_space<vmem>>, vector<1x8x128xf32>
      %33 = vector.shape_cast %32 : vector<1x8x128xf32> to vector<8x128xf32>
      %34 = vector.shape_cast %28 : vector<8x128xf32> to vector<1x8x128xf32>
      tpu.vector_store %arg5[%c0_23, %c0_24, %c0_25], %34 {strides = array<i32>} : memref<1x8x128xf32, #tpu.memory_space<vmem>>, vector<1x8x128xf32>,
    } else {
    }
    %c0 = arith.constant 0 : index
    %c0_2 = arith.constant 0 : index
    %4 = vector.load %arg1[%c0, %c0_2] : memref<16x128xf32, #tpu.memory_space<vmem>>, vector<16x128xf32>
    %c0_3 = arith.constant 0 : index
    %c0_4 = arith.constant 0 : index
    %5 = vector.load %arg2[%c0_3, %c0_4] : memref<16x128xf32, #tpu.memory_space<vmem>>, vector<16x128xf32>
    %6 = arith.mulf %4, %5 : vector<16x128xf32>
    %7 = arith.mulf %4, %4 : vector<16x128xf32>
    %8 = arith.mulf %5, %5 : vector<16x128xf32>
    %9 = arith.addf %7, %8 : vector<16x128xf32>
    %10 = vector.shape_cast %6 : vector<16x128xf32> to vector<2x8x128xf32>
    %cst = arith.constant dense<0.000000e+00> : vector<8x128xf32>
    %11 = vector.multi_reduction <add>, %10, %cst [0] : vector<2x8x128xf32> to vector<8x128xf32>
    %12 = vector.shape_cast %9 : vector<16x128xf32> to vector<2x8x128xf32>
    %cst_5 = arith.constant dense<0.000000e+00> : vector<8x128xf32>
    %13 = vector.multi_reduction <add>, %12, %cst_5 [0] : vector<2x8x128xf32> to vector<8x128xf32>
    %c0_6 = arith.constant 0 : index
    %c0_7 = arith.constant 0 : index
    %c0_8 = arith.constant 0 : index
    %14 = vector.load %arg4[%c0_6, %c0_7, %c0_8] : memref<1x8x128xf32, #tpu.memory_space<vmem>>, vector<1x8x128xf32>
    %15 = vector.shape_cast %14 : vector<1x8x128xf32> to vector<8x128xf32>
    %16 = arith.addf %15, %11 : vector<8x128xf32>
    %c0_9 = arith.constant 0 : index
    %c0_10 = arith.constant 0 : index
    %c0_11 = arith.constant 0 : index
    %17 = vector.load %arg4[%c0_9, %c0_10, %c0_11] : memref<1x8x128xf32, #tpu.memory_space<vmem>>, vector<1x8x128xf32>
    %18 = vector.shape_cast %17 : vector<1x8x128xf32> to vector<8x128xf32>
    %19 = vector.shape_cast %16 : vector<8x128xf32> to vector<1x8x128xf32>
    tpu.vector_store %arg4[%c0_9, %c0_10, %c0_11], %19 {strides = array<i32>} : memref<1x8x128xf32, #tpu.memory_space<vmem>>, vector<1x8x128xf32>,
    %c0_12 = arith.constant 0 : index
    %c0_13 = arith.constant 0 : index
    %c0_14 = arith.constant 0 : index
    %20 = vector.load %arg5[%c0_12, %c0_13, %c0_14] : memref<1x8x128xf32, #tpu.memory_space<vmem>>, vector<1x8x128xf32>
    %21 = vector.shape_cast %20 : vector<1x8x128xf32> to vector<8x128xf32>
    %22 = arith.addf %21, %13 : vector<8x128xf32>
    %c0_15 = arith.constant 0 : index
    %c0_16 = arith.constant 0 : index
    %c0_17 = arith.constant 0 : index
    %23 = vector.load %arg5[%c0_15, %c0_16, %c0_17] : memref<1x8x128xf32, #tpu.memory_space<vmem>>, vector<1x8x128xf32>
    %24 = vector.shape_cast %23 : vector<1x8x128xf32> to vector<8x128xf32>
    %25 = vector.shape_cast %22 : vector<8x128xf32> to vector<1x8x128xf32>
    tpu.vector_store %arg5[%c0_15, %c0_16, %c0_17], %25 {strides = array<i32>} : memref<1x8x128xf32, #tpu.memory_space<vmem>>, vector<1x8x128xf32>,
    %26 = arith.extui %1 : i1 to i32
    %c0_i32_18 = arith.constant 0 : i32
    %27 = arith.cmpi ne, %26, %c0_i32_18 : i32
    scf.if %27 {
      %c0_19 = arith.constant 0 : index
      %c0_20 = arith.constant 0 : index
      %c0_21 = arith.constant 0 : index
      %28 = vector.load %arg4[%c0_19, %c0_20, %c0_21] : memref<1x8x128xf32, #tpu.memory_space<vmem>>, vector<1x8x128xf32>
      %29 = vector.shape_cast %28 : vector<1x8x128xf32> to vector<8x128xf32>
      %30 = vector.shape_cast %29 : vector<8x128xf32> to vector<1x8x128xf32>
      %cst_22 = arith.constant dense<0.000000e+00> : vector<1xf32>
      %31 = vector.multi_reduction <add>, %30, %cst_22 [1, 2] : vector<1x8x128xf32> to vector<1xf32>
      %32 = vector.shape_cast %31 : vector<1xf32> to vector<1x1x1xf32>
      %33 = vector.extract %32[0, 0, 0] : f32 from vector<1x1x1xf32>
      %c0_23 = arith.constant 0 : index
      %c0_24 = arith.constant 0 : index
      %34 = memref.load %arg3[%c0_23, %c0_24] : memref<1x2xf32, #tpu.memory_space<smem>>
      memref.store %33, %arg3[%c0_23, %c0_24] : memref<1x2xf32, #tpu.memory_space<smem>>
      %c0_25 = arith.constant 0 : index
      %c0_26 = arith.constant 0 : index
      %c0_27 = arith.constant 0 : index
      %35 = vector.load %arg5[%c0_25, %c0_26, %c0_27] : memref<1x8x128xf32, #tpu.memory_space<vmem>>, vector<1x8x128xf32>
      %36 = vector.shape_cast %35 : vector<1x8x128xf32> to vector<8x128xf32>
      %37 = vector.shape_cast %36 : vector<8x128xf32> to vector<1x8x128xf32>
      %cst_28 = arith.constant dense<0.000000e+00> : vector<1xf32>
      %38 = vector.multi_reduction <add>, %37, %cst_28 [1, 2] : vector<1x8x128xf32> to vector<1xf32>
      %39 = vector.shape_cast %38 : vector<1xf32> to vector<1x1x1xf32>
      %40 = vector.extract %39[0, 0, 0] : f32 from vector<1x1x1xf32>
      %c0_29 = arith.constant 0 : index
      %c1 = arith.constant 1 : index
      %41 = memref.load %arg3[%c0_29, %c1] : memref<1x2xf32, #tpu.memory_space<smem>>
      memref.store %40, %arg3[%c0_29, %c1] : memref<1x2xf32, #tpu.memory_space<smem>>
    } else {
    }
    return
  }
  func.func @transform_0(%arg0: i32) -> (i32, i32) {
    %c0_i32 = arith.constant 0 : i32
    %c0_i32_0 = arith.constant 0 : i32
    return %arg0, %c0_i32 : i32, i32
  }
  func.func @transform_1(%arg0: i32) -> (i32, i32) {
    %c0_i32 = arith.constant 0 : i32
    %c0_i32_0 = arith.constant 0 : i32
    return %arg0, %c0_i32 : i32, i32
  }
  func.func @transform_2(%arg0: i32) -> (i32, i32) {
    %c0_i32 = arith.constant 0 : i32
    %c0_i32_0 = arith.constant 0 : i32
    %c0_i32_1 = arith.constant 0 : i32
    return %c0_i32, %c0_i32_0 : i32, i32
  }
}

</mosaic_0001>

<llo_original>
// kernel: tpu_custom_call.1
$region0: #{tpu_custom_call.1}
  #allocation0 [shape = 'u32[]', space=smem, size = 0x4, offset = 0x4, fixed_abs, tag = 'smem constant byte address 0x4 - core index']
  #allocation1 [shape = 'u32[72,128]{1,0:T(1,128)}', space=vmem, size = 0x9000, scoped, tag = 'internal scratch']
  #allocation2 [shape = 'f32[1,8,128]{2,1,0:T(8,128)}', space=vmem, size = 0x1000, scoped, tag = 'scratch operand']
  #allocation3 [shape = 'f32[1,8,128]{2,1,0:T(8,128)}', space=vmem, size = 0x1000, scoped, tag = 'scratch operand']
  %s0 = inlined_call_operand.hbm [shape: f32[16,128], index: 0, kind: input, shape index: {}]
  %s1 = inlined_call_operand.hbm [shape: f32[16,128], index: 1, kind: input, shape index: {}]
  %s2 = inlined_call_operand.hbm [shape: f32[1,2], index: 2, kind: output, shape index: {}]
  %s3 = sld [smem:[#allocation0]]
  $region34: #{tpu_custom_call.1} parent=0
    _
  %s5 = ssub.s32 1, %s3
  %s6 = scalar_select 0, %s5, %s3
  $region1: #{tpu_custom_call.1} parent=0
    #allocation4 [shape = 'u8[8192]{0}', space=vmem, size = 0x2000, scoped, tag = 'input window, operand 0, single buffered']
    #allocation5 [shape = 's32[1]{0}', space=sflag, size = 0x4, scoped, tag = 'scoped memory for tpu_custom_call.1']
    #allocation6 [shape = 's32[1]{0}', space=sflag, size = 0x4, scoped, tag = 'scoped memory for tpu_custom_call.1']
    #allocation7 [shape = 'u8[8192]{0}', space=vmem, size = 0x2000, scoped, tag = 'input window, operand 1, single buffered']
    #allocation8 [shape = 's32[1]{0}', space=sflag, size = 0x4, scoped, tag = 'scoped memory for tpu_custom_call.1']
    #allocation9 [shape = 'u8[512]{0}', space=smem, size = 0x200, scoped, tag = 'output window, operand 0, single buffered']
    %7 = vsyncpa [#allocation5], 0
    %8 = vsyncpa [#allocation8], 0
    %9 = vsyncpa [#allocation6], 0
    // Predicated region
    $region2: #{tpu_custom_call.1} parent=1 // pred_check
      _
    $region3: #{tpu_custom_call.1} parent=1 // pred_check_branch
      %11 = sbr.rel (0) target = $region5
    $region4: #{tpu_custom_call.1} parent=1 // pred_region
      %13 = vsyncadd [#allocation5], 0
      %s14 = sshll.u32 %s0, 4
      %s15 = int_to_ptr.hbm [resolvable:$true] %s14
      %s16 = sshll.u32 [#allocation4], 4
      %s17 = int_to_ptr.vmem [resolvable:$true] %s16
      %22 = dma.hbm_to_vmem [thread:$0]  %s15, 256, %s17, [#allocation5], 128, 128, 8
    $region5: #{tpu_custom_call.1} parent=1 // pred_fallthru
      _
    // Predicated region
    $region6: #{tpu_custom_call.1} parent=1 // pred_check
      _
    $region7: #{tpu_custom_call.1} parent=1 // pred_check_branch
      %24 = sbr.rel (0) target = $region9
    $region8: #{tpu_custom_call.1} parent=1 // pred_region
      %26 = vsyncadd [#allocation8], 0
      %s27 = sshll.u32 %s1, 4
      %s28 = int_to_ptr.hbm [resolvable:$true] %s27
      %s29 = sshll.u32 [#allocation7], 4
      %s30 = int_to_ptr.vmem [resolvable:$true] %s29
      %35 = dma.hbm_to_vmem [thread:$0]  %s28, 256, %s30, [#allocation8], 128, 128, 8
    $region9: #{tpu_custom_call.1} parent=1 // pred_fallthru
      _
    // Predicated region
    $region10: #{tpu_custom_call.1} parent=1 // pred_check
      _
    $region11: #{tpu_custom_call.1} parent=1 // pred_check_branch
      %37 = sbr.rel (0) target = $region13
    $region12: #{tpu_custom_call.1} parent=1 // pred_region
      %39 = dma.done [#allocation5], 256
    $region13: #{tpu_custom_call.1} parent=1 // pred_fallthru
      _
    // Predicated region
    $region14: #{tpu_custom_call.1} parent=1 // pred_check
      _
    $region15: #{tpu_custom_call.1} parent=1 // pred_check_branch
      %41 = sbr.rel (0) target = $region17
    $region16: #{tpu_custom_call.1} parent=1 // pred_region
      %43 = dma.done [#allocation8], 256
    $region17: #{tpu_custom_call.1} parent=1 // pred_fallthru
      _
    %p44 = scmp.eq.s32.totalorder 0, 0
    // Predicated region
    $region18: #{tpu_custom_call.1} parent=1 // pred_check
      %p45 = pneg %p44
    $region19: #{tpu_custom_call.1} parent=1 // pred_check_branch
      %47 = sbr.rel (%p45) target = $region21
    $region20: #{tpu_custom_call.1} parent=1 // pred_region
      %48 = vst [vmem:[#allocation2] sm:$0xff] 0.0
      %49 = vst [vmem:[#allocation3] sm:$0xff] 0.0
    $region21: #{tpu_custom_call.1} parent=1 // pred_fallthru
      _
    %v50 = vld [vmem:[#allocation4] sm:$0xff]
    %v51 = vld [vmem:[#allocation4 + $0x8] sm:$0xff]
    %v52 = vld [vmem:[#allocation7] sm:$0xff]
    %v53 = vld [vmem:[#allocation7 + $0x8] sm:$0xff]
    %v54 = vmul.f32 %v50, %v52
    %v55 = vmul.f32 %v51, %v53
    %v56 = vmul.f32 %v50, %v50
    %v57 = vmul.f32 %v51, %v51
    %v58 = vmul.f32 %v52, %v52
    %v59 = vmul.f32 %v53, %v53
    %v60 = vadd.f32 %v56, %v58
    %v61 = vadd.f32 %v57, %v59
    %v62 = vadd.f32 %v54, %v55
    %v63 = vadd.f32 %v60, %v61
    %v64 = vld [vmem:[#allocation2] sm:$0xff]
    %v65 = vadd.f32 %v64, %v62
    %66 = vst [vmem:[#allocation2] sm:$0xff] %v65
    %v67 = vld [vmem:[#allocation3] sm:$0xff]
    %v68 = vadd.f32 %v67, %v63
    %69 = vst [vmem:[#allocation3] sm:$0xff] %v68
    // Predicated region
    $region22: #{tpu_custom_call.1} parent=1 // pred_check
      %p70 = pneg %p44
    $region23: #{tpu_custom_call.1} parent=1 // pred_check_branch
      %72 = sbr.rel (%p70) target = $region25
    $region24: #{tpu_custom_call.1} parent=1 // pred_region
      %v73 = vld [vmem:[#allocation2] sm:$0xff]
      %74 = vadd.xlane.f32.xlu0 %v73
      %v75 = vpop.xlane.xlu0 %74
      %v76 = vrot.slane %v75, 4
      %v77 = vadd.f32 %v75, %v76
      %v78 = vrot.slane %v77, 2
      %v79 = vadd.f32 %v77, %v78
      %v80 = vrot.slane %v79, 1
      %v81 = vadd.f32 %v79, %v80
      %s82 = vtos %v81
      %s83 = scalar_lea.smem [#allocation9], 0
      %84 = sst [smem:[%s83]] %s82
      %v85 = vld [vmem:[#allocation3] sm:$0xff]
      %86 = vadd.xlane.f32.xlu0 %v85
      %v87 = vpop.xlane.xlu0 %86
      %v88 = vrot.slane %v87, 4
      %v89 = vadd.f32 %v87, %v88
      %v90 = vrot.slane %v89, 2
      %v91 = vadd.f32 %v89, %v90
      %v92 = vrot.slane %v91, 1
      %v93 = vadd.f32 %v91, %v92
      %s94 = vtos %v93
      %s95 = scalar_lea.smem [#allocation9], 1
      %96 = sst [smem:[%s95]] %s94
    $region25: #{tpu_custom_call.1} parent=1 // pred_fallthru
      _
    // Predicated region
    $region26: #{tpu_custom_call.1} parent=1 // pred_check
      _
    $region27: #{tpu_custom_call.1} parent=1 // pred_check_branch
      %98 = sbr.rel (0) target = $region29
    $region28: #{tpu_custom_call.1} parent=1 // pred_region
      %100 = vsyncadd [#allocation6], 0
      %s102 = sshll.u32 %s2, 4
      %s103 = int_to_ptr.hbm [resolvable:$true] %s102
      %105 = dma.smem_to_hbm [#allocation9], 16, %s103, [#allocation6]
    $region29: #{tpu_custom_call.1} parent=1 // pred_fallthru
      _
    // Predicated region
    $region30: #{tpu_custom_call.1} parent=1 // pred_check
      _
    $region31: #{tpu_custom_call.1} parent=1 // pred_check_branch
      %107 = sbr.rel (0) target = $region33
    $region32: #{tpu_custom_call.1} parent=1 // pred_region
      %109 = dma.done [#allocation6], 16
    $region33: #{tpu_custom_call.1} parent=1 // pred_fallthru
      _
    %110 = sfence
    %111 = vsyncpa [#allocation5], 1
    %112 = vsyncpa [#allocation8], 1
    %113 = vsyncpa [#allocation6], 1

</llo_original>
